<compile_context>
chip_gen: v7x
topology: tpu7x:2x2x1
jax: 0.10.0
libtpu: 0.0.40
codegen_flags: <defaults>
</compile_context>

<pallas_src>
import jax
import jax.numpy as jnp
from jax import lax
from jax.experimental import pallas as pl
from jax.experimental.pallas import tpu as pltpu


def _attention_kernel(x_ref, wq_ref, wk_ref, wv_ref, wproj_ref, bproj_ref,
                      out_ref, acc_ref):
    h = pl.program_id(1)
    x = x_ref[0]                      # (N, C), compute dtype
    dt = x_ref.dtype

    # Per-head projections; the (C, dh) weight slab for head `h` was selected
    # at DMA time by the BlockSpec index_map. `scale` is pre-folded into wq.
    q = jnp.dot(x, wq_ref[0], preferred_element_type=jnp.float32)   # (N, dh)
    k = jnp.dot(x, wk_ref[0], preferred_element_type=jnp.float32)   # (N, dh)
    v = jnp.dot(x, wv_ref[0], preferred_element_type=jnp.float32)   # (N, dh)

    # Scores: q @ k^T (contract the head dim of both) -> (N, N), f32 accum.
    s = lax.dot_general(q.astype(dt), k.astype(dt),
                        (((1,), (1,)), ((), ())),
                        preferred_element_type=jnp.float32)

    # Softmax in f32; denominator reciprocal on the EUP (approx=True).
    s = s - jnp.max(s, axis=-1, keepdims=True)
    p = jnp.exp(s)
    p = p * pl.reciprocal(jnp.sum(p, axis=-1, keepdims=True), approx=True)
    # attn_drop is Dropout(p=0.0) -> identity in forward.

    # Per-head attention output and its contribution to the output projection.
    o = jnp.dot(p.astype(dt), v.astype(dt),
                preferred_element_type=jnp.float32)                 # (N, dh)
    contrib = jnp.dot(o.astype(dt), wproj_ref[0],
                      preferred_element_type=jnp.float32)           # (N, C)

    @pl.when(h == 0)
    def _():
        # Initialize the resident f32 accumulator with the proj bias.
        acc_ref[...] = jnp.broadcast_to(
            bproj_ref[...].astype(jnp.float32), acc_ref.shape)

    acc_ref[...] += contrib

    @pl.when(h == pl.num_programs(1) - 1)
    def _():
        # proj_drop is Dropout(p=0.0) -> identity.
        out_ref[0] = acc_ref[...].astype(out_ref.dtype)


def attention_pallas(x, wqkv, wproj, bproj, num_heads, *, compute_dtype=None):
    """Multi-head self-attention matching the PyTorch module's forward.

    x:     (B, N, C)
    wqkv:  (3C, C)  -- nn.Linear(dim, 3*dim, bias=False).weight (rows = out feats)
    wproj: (C, C)   -- nn.Linear(dim, dim).weight
    bproj: (C,)     -- nn.Linear(dim, dim).bias
    compute_dtype: optional MXU operand dtype (e.g. jnp.bfloat16). Accumulation
      and softmax statistics stay f32; output dtype follows x.dtype.
    """
    B, N, C = x.shape
    H = num_heads
    dh = C // H
    scale = dh ** (-0.5)
    dt = compute_dtype or x.dtype

    # Split the stacked qkv weight into q/k/v, transpose to input-major, and
    # regroup into head-major slabs (H, C_in, dh) so the head axis is a leading
    # (non-lane) dim that the grid can index.
    wq, wk, wv = jnp.split(wqkv, 3, axis=0)                   # each (C_out, C_in)

    def per_head_in_major(w):                                 # -> (H, C_in, dh)
        return jnp.transpose(w.T.reshape(C, H, dh), (1, 0, 2))

    wq_h = per_head_in_major(wq) * scale                      # fold scale into q
    wk_h = per_head_in_major(wk)
    wv_h = per_head_in_major(wv)
    wp_h = wproj.T.reshape(H, dh, C)                          # (H, dh, C_out)

    return pl.pallas_call(
        _attention_kernel,
        out_shape=jax.ShapeDtypeStruct((B, N, C), x.dtype),
        grid_spec=pltpu.PrefetchScalarGridSpec(
            num_scalar_prefetch=0,
            grid=(B, H),
            in_specs=[
                pl.BlockSpec((1, N, C), lambda b, h: (b, 0, 0)),    # x
                pl.BlockSpec((1, C, dh), lambda b, h: (h, 0, 0)),   # wq head slab
                pl.BlockSpec((1, C, dh), lambda b, h: (h, 0, 0)),   # wk head slab
                pl.BlockSpec((1, C, dh), lambda b, h: (h, 0, 0)),   # wv head slab
                pl.BlockSpec((1, dh, C), lambda b, h: (h, 0, 0)),   # wproj head rows
                pl.BlockSpec((1, C), lambda b, h: (0, 0)),          # proj bias
            ],
            out_specs=pl.BlockSpec((1, N, C), lambda b, h: (b, 0, 0)),
            scratch_shapes=[pltpu.VMEM((N, C), jnp.float32)],       # f32 accumulator
        ),
        compiler_params=pltpu.CompilerParams(
            dimension_semantics=("parallel", "arbitrary"),
            vmem_limit_bytes=64 * 1024 * 1024,
        ),
    )(x.astype(dt), wq_h.astype(dt), wk_h.astype(dt), wv_h.astype(dt),
      wp_h.astype(dt), bproj.reshape(1, C).astype(jnp.float32))


def attention_ref(x, wqkv, wproj, bproj, num_heads):
    """Pure-JAX reference mirroring the PyTorch forward exactly."""
    B, N, C = x.shape
    dh = C // num_heads
    scale = dh ** (-0.5)
    qkv = x @ wqkv.T                                              # (B, N, 3C)
    qkv = qkv.reshape(B, N, 3, num_heads, dh).transpose(2, 0, 3, 1, 4)
    q, k, v = qkv[0], qkv[1], qkv[2]                              # (B, H, N, dh)
    attn = jnp.einsum('bhqd,bhkd->bhqk', q, k) * scale
    attn = jax.nn.softmax(attn, axis=-1)
    o = jnp.einsum('bhqk,bhkd->bhqd', attn, v)
    o = o.transpose(0, 2, 1, 3).reshape(B, N, C)
    return o @ wproj.T + bproj


if __name__ == "__main__":
    B, N, C = 2, 8, 32
    num_heads = 8

    key = jax.random.PRNGKey(0)
    kx, kqkv, kproj, kb = jax.random.split(key, 4)

    x = jax.random.normal(kx, (B, N, C), dtype=jnp.float32)
    # PyTorch Linear weight layouts: qkv (3C, C), proj (C, C), bias (C,).
    wqkv = jax.random.normal(kqkv, (3 * C, C), dtype=jnp.float32) * 0.05
    wproj = jax.random.normal(kproj, (C, C), dtype=jnp.float32) * 0.05
    bproj = jax.random.normal(kb, (C,), dtype=jnp.float32) * 0.05

    ref = attention_ref(x, wqkv, wproj, bproj, num_heads)

    # f32-operand path.
    out = attention_pallas(x, wqkv, wproj, bproj, num_heads)
    out = jax.block_until_ready(out)
    assert out.shape == (B, N, C)
    assert jnp.allclose(out, ref, atol=1e-3, rtol=1e-3), "f32 mismatch vs reference"

    # bf16 MXU-operand path (f32 accumulation / f32 softmax stats inside kernel).
    out_bf16 = attention_pallas(x, wqkv, wproj, bproj, num_heads,
                                compute_dtype=jnp.bfloat16)
    out_bf16 = jax.block_until_ready(out_bf16)
    assert out_bf16.dtype == x.dtype
    assert jnp.allclose(out_bf16, ref, atol=3e-2, rtol=3e-2), \
        "bf16 mismatch vs reference"

    print("KERNEL_OK")
</pallas_src>

<mosaic_0001>
module attributes {stable_mosaic.version = 11 : i64} {
  func.func @_attention_kernel(%arg0: i32, %arg1: i32, %arg2: memref<1x8x32xf32, #tpu.memory_space<vmem>>, %arg3: memref<1x32x4xf32, #tpu.memory_space<vmem>>, %arg4: memref<1x32x4xf32, #tpu.memory_space<vmem>>, %arg5: memref<1x32x4xf32, #tpu.memory_space<vmem>>, %arg6: memref<1x4x32xf32, #tpu.memory_space<vmem>>, %arg7: memref<1x32xf32, #tpu.memory_space<vmem>>, %arg8: memref<1x8x32xf32, #tpu.memory_space<vmem>>, %arg9: memref<8x32xf32, #tpu.memory_space<vmem>>) attributes {dimension_semantics = [#tpu.dimension_semantics<parallel>, #tpu.dimension_semantics<arbitrary>], iteration_bounds = array<i64: 2, 8>, scalar_prefetch = 0 : i64, scratch_operands = 1 : i64, tpu.core_type = #tpu.core_type<tc>, window_params = [{transform_indices = @transform_0, window_bounds = array<i64: 1, 8, 32>}, {transform_indices = @transform_1, window_bounds = array<i64: 1, 32, 4>}, {transform_indices = @transform_2, window_bounds = array<i64: 1, 32, 4>}, {transform_indices = @transform_3, window_bounds = array<i64: 1, 32, 4>}, {transform_indices = @transform_4, window_bounds = array<i64: 1, 4, 32>}, {pipeline_mode = #tpu.pipeline_mode<synchronous>, transform_indices = @transform_5, window_bounds = array<i64: 1, 32>}, {transform_indices = @transform_6, window_bounds = array<i64: 1, 8, 32>}]} {
    %c0 = arith.constant 0 : index
    %c0_0 = arith.constant 0 : index
    %c0_1 = arith.constant 0 : index
    %0 = vector.load %arg2[%c0, %c0_0, %c0_1] : memref<1x8x32xf32, #tpu.memory_space<vmem>>, vector<1x8x32xf32>
    %1 = vector.shape_cast %0 : vector<1x8x32xf32> to vector<8x32xf32>
    %c0_2 = arith.constant 0 : index
    %c0_3 = arith.constant 0 : index
    %c0_4 = arith.constant 0 : index
    %2 = vector.load %arg3[%c0_2, %c0_3, %c0_4] : memref<1x32x4xf32, #tpu.memory_space<vmem>>, vector<1x32x4xf32>
    %3 = vector.shape_cast %2 : vector<1x32x4xf32> to vector<32x4xf32>
    %cst = arith.constant dense<0.000000e+00> : vector<8x4xf32>
    %4 = tpu.matmul %1, %3, %cst {dimension_numbers = #tpu.dot_dimension_numbers<[1], [0], [0], [1], [0, 0, 1, 1], [], []>} : vector<8x32xf32>, vector<32x4xf32>, vector<8x4xf32> -> vector<8x4xf32>
    %c0_5 = arith.constant 0 : index
    %c0_6 = arith.constant 0 : index
    %c0_7 = arith.constant 0 : index
    %5 = vector.load %arg4[%c0_5, %c0_6, %c0_7] : memref<1x32x4xf32, #tpu.memory_space<vmem>>, vector<1x32x4xf32>
    %6 = vector.shape_cast %5 : vector<1x32x4xf32> to vector<32x4xf32>
    %cst_8 = arith.constant dense<0.000000e+00> : vector<8x4xf32>
    %7 = tpu.matmul %1, %6, %cst_8 {dimension_numbers = #tpu.dot_dimension_numbers<[1], [0], [0], [1], [0, 0, 1, 1], [], []>} : vector<8x32xf32>, vector<32x4xf32>, vector<8x4xf32> -> vector<8x4xf32>
    %c0_9 = arith.constant 0 : index
    %c0_10 = arith.constant 0 : index
    %c0_11 = arith.constant 0 : index
    %8 = vector.load %arg5[%c0_9, %c0_10, %c0_11] : memref<1x32x4xf32, #tpu.memory_space<vmem>>, vector<1x32x4xf32>
    %9 = vector.shape_cast %8 : vector<1x32x4xf32> to vector<32x4xf32>
    %cst_12 = arith.constant dense<0.000000e+00> : vector<8x4xf32>
    %10 = tpu.matmul %1, %9, %cst_12 {dimension_numbers = #tpu.dot_dimension_numbers<[1], [0], [0], [1], [0, 0, 1, 1], [], []>} : vector<8x32xf32>, vector<32x4xf32>, vector<8x4xf32> -> vector<8x4xf32>
    %cst_13 = arith.constant dense<0.000000e+00> : vector<8x8xf32>
    %11 = tpu.matmul %4, %7, %cst_13 {dimension_numbers = #tpu.dot_dimension_numbers<[1], [1], [0], [0], [0, 0, 1, 0], [], []>} : vector<8x4xf32>, vector<8x4xf32>, vector<8x8xf32> -> vector<8x8xf32>
    %cst_14 = arith.constant dense<0xFF800000> : vector<8xf32>
    %12 = vector.multi_reduction <maximumf>, %11, %cst_14 [1] : vector<8x8xf32> to vector<8xf32>
    %13 = vector.shape_cast %12 : vector<8xf32> to vector<8x1xf32>
    %14 = vector.broadcast %13 : vector<8x1xf32> to vector<8x8xf32>
    %15 = arith.subf %11, %14 : vector<8x8xf32>
    %16 = math.exp %15 : vector<8x8xf32>
    %cst_15 = arith.constant dense<0.000000e+00> : vector<8xf32>
    %17 = vector.multi_reduction <add>, %16, %cst_15 [1] : vector<8x8xf32> to vector<8xf32>
    %18 = vector.shape_cast %17 : vector<8xf32> to vector<8x1xf32>
    %19 = tpu.reciprocal %18 {approx = true} : vector<8x1xf32> -> vector<8x1xf32>
    %20 = vector.broadcast %19 : vector<8x1xf32> to vector<8x8xf32>
    %21 = arith.mulf %16, %20 : vector<8x8xf32>
    %cst_16 = arith.constant dense<0.000000e+00> : vector<8x4xf32>
    %22 = tpu.matmul %21, %10, %cst_16 {dimension_numbers = #tpu.dot_dimension_numbers<[1], [0], [0], [1], [0, 0, 1, 1], [], []>} : vector<8x8xf32>, vector<8x4xf32>, vector<8x4xf32> -> vector<8x4xf32>
    %c0_17 = arith.constant 0 : index
    %c0_18 = arith.constant 0 : index
    %c0_19 = arith.constant 0 : index
    %23 = vector.load %arg6[%c0_17, %c0_18, %c0_19] : memref<1x4x32xf32, #tpu.memory_space<vmem>>, vector<1x4x32xf32>
    %24 = vector.shape_cast %23 : vector<1x4x32xf32> to vector<4x32xf32>
    %cst_20 = arith.constant dense<0.000000e+00> : vector<8x32xf32>
    %25 = tpu.matmul %22, %24, %cst_20 {dimension_numbers = #tpu.dot_dimension_numbers<[1], [0], [0], [1], [0, 0, 1, 1], [], []>} : vector<8x4xf32>, vector<4x32xf32>, vector<8x32xf32> -> vector<8x32xf32>
    %c0_i32 = arith.constant 0 : i32
    %26 = arith.cmpi eq, %arg1, %c0_i32 : i32
    %27 = arith.extui %26 : i1 to i32
    %c0_i32_21 = arith.constant 0 : i32
    %28 = arith.cmpi ne, %27, %c0_i32_21 : i32
    scf.if %28 {
      %c0_27 = arith.constant 0 : index
      %c0_28 = arith.constant 0 : index
      %35 = vector.load %arg7[%c0_27, %c0_28] : memref<1x32xf32, #tpu.memory_space<vmem>>, vector<1x32xf32>
      %36 = vector.shape_cast %35 : vector<1x32xf32> to vector<1x32xf32>
      %37 = vector.broadcast %36 : vector<1x32xf32> to vector<8x32xf32>
      %c0_29 = arith.constant 0 : index
      %c0_30 = arith.constant 0 : index
      %38 = vector.load %arg9[%c0_29, %c0_30] : memref<8x32xf32, #tpu.memory_space<vmem>>, vector<8x32xf32>
      tpu.vector_store %arg9[%c0_29, %c0_30], %37 {strides = array<i32>} : memref<8x32xf32, #tpu.memory_space<vmem>>, vector<8x32xf32>,
    } else {
    }
    %c0_22 = arith.constant 0 : index
    %c0_23 = arith.constant 0 : index
    %29 = vector.load %arg9[%c0_22, %c0_23] : memref<8x32xf32, #tpu.memory_space<vmem>>, vector<8x32xf32>
    %30 = arith.addf %29, %25 : vector<8x32xf32>
    %c0_24 = arith.constant 0 : index
    %c0_25 = arith.constant 0 : index
    %31 = vector.load %arg9[%c0_24, %c0_25] : memref<8x32xf32, #tpu.memory_space<vmem>>, vector<8x32xf32>
    tpu.vector_store %arg9[%c0_24, %c0_25], %30 {strides = array<i32>} : memref<8x32xf32, #tpu.memory_space<vmem>>, vector<8x32xf32>,
    %c7_i32 = arith.constant 7 : i32
    %32 = arith.cmpi eq, %arg1, %c7_i32 : i32
    %33 = arith.extui %32 : i1 to i32
    %c0_i32_26 = arith.constant 0 : i32
    %34 = arith.cmpi ne, %33, %c0_i32_26 : i32
    scf.if %34 {
      %c0_27 = arith.constant 0 : index
      %c0_28 = arith.constant 0 : index
      %35 = vector.load %arg9[%c0_27, %c0_28] : memref<8x32xf32, #tpu.memory_space<vmem>>, vector<8x32xf32>
      %c0_29 = arith.constant 0 : index
      %c0_30 = arith.constant 0 : index
      %c0_31 = arith.constant 0 : index
      %36 = vector.load %arg8[%c0_29, %c0_30, %c0_31] : memref<1x8x32xf32, #tpu.memory_space<vmem>>, vector<1x8x32xf32>
      %37 = vector.shape_cast %36 : vector<1x8x32xf32> to vector<8x32xf32>
      %38 = vector.shape_cast %35 : vector<8x32xf32> to vector<1x8x32xf32>
      tpu.vector_store %arg8[%c0_29, %c0_30, %c0_31], %38 {strides = array<i32>} : memref<1x8x32xf32, #tpu.memory_space<vmem>>, vector<1x8x32xf32>,
    } else {
    }
    return
  }
  func.func @transform_0(%arg0: i32, %arg1: i32) -> (i32, i32, i32) {
    %c0_i32 = arith.constant 0 : i32
    %c0_i32_0 = arith.constant 0 : i32
    %c0_i32_1 = arith.constant 0 : i32
    return %arg0, %c0_i32, %c0_i32_0 : i32, i32, i32
  }
  func.func @transform_1(%arg0: i32, %arg1: i32) -> (i32, i32, i32) {
    %c0_i32 = arith.constant 0 : i32
    %c0_i32_0 = arith.constant 0 : i32
    %c0_i32_1 = arith.constant 0 : i32
    return %arg1, %c0_i32, %c0_i32_0 : i32, i32, i32
  }
  func.func @transform_2(%arg0: i32, %arg1: i32) -> (i32, i32, i32) {
    %c0_i32 = arith.constant 0 : i32
    %c0_i32_0 = arith.constant 0 : i32
    %c0_i32_1 = arith.constant 0 : i32
    return %arg1, %c0_i32, %c0_i32_0 : i32, i32, i32
  }
  func.func @transform_3(%arg0: i32, %arg1: i32) -> (i32, i32, i32) {
    %c0_i32 = arith.constant 0 : i32
    %c0_i32_0 = arith.constant 0 : i32
    %c0_i32_1 = arith.constant 0 : i32
    return %arg1, %c0_i32, %c0_i32_0 : i32, i32, i32
  }
  func.func @transform_4(%arg0: i32, %arg1: i32) -> (i32, i32, i32) {
    %c0_i32 = arith.constant 0 : i32
    %c0_i32_0 = arith.constant 0 : i32
    %c0_i32_1 = arith.constant 0 : i32
    return %arg1, %c0_i32, %c0_i32_0 : i32, i32, i32
  }
  func.func @transform_5(%arg0: i32, %arg1: i32) -> (i32, i32) {
    %c0_i32 = arith.constant 0 : i32
    %c0_i32_0 = arith.constant 0 : i32
    %c0_i32_1 = arith.constant 0 : i32
    return %c0_i32, %c0_i32_0 : i32, i32
  }
  func.func @transform_6(%arg0: i32, %arg1: i32) -> (i32, i32, i32) {
    %c0_i32 = arith.constant 0 : i32
    %c0_i32_0 = arith.constant 0 : i32
    %c0_i32_1 = arith.constant 0 : i32
    return %arg0, %c0_i32, %c0_i32_0 : i32, i32, i32
  }
}

</mosaic_0001>

<llo_original>
// kernel: tpu_custom_call.1
$region0: #{tpu_custom_call.1}
  #allocation0 [shape = 'u32[]', space=smem, size = 0x4, offset = 0x4, fixed_abs, tag = 'smem constant byte address 0x4 - core index']
  #allocation1 [shape = 'u32[144,128]{1,0:T(1,128)}', space=vmem, size = 0x12000, scoped, tag = 'internal scratch']
  #allocation2 [shape = 'f32[8,32]{1,0:T(8,128)}', space=vmem, size = 0x1000, scoped, tag = 'scratch operand']
  %s0 = inlined_call_operand.hbm [shape: f32[2,8,32], index: 0, kind: input, shape index: {}]
  %s1 = inlined_call_operand.hbm [shape: f32[8,32,4], index: 1, kind: input, shape index: {}]
  %s2 = inlined_call_operand.hbm [shape: f32[8,32,4], index: 2, kind: input, shape index: {}]
  %s3 = inlined_call_operand.hbm [shape: f32[8,32,4], index: 3, kind: input, shape index: {}]
  %s4 = inlined_call_operand.hbm [shape: f32[8,4,32], index: 4, kind: input, shape index: {}]
  %s5 = inlined_call_operand.hbm [shape: f32[1,32], index: 5, kind: input, shape index: {}]
  %s6 = inlined_call_operand.hbm [shape: f32[2,8,32], index: 6, kind: output, shape index: {}]
  %s7 = sld [smem:[#allocation0]]
  $region89: #{tpu_custom_call.1} parent=0
    _
  %s9 = ssub.s32 1, %s7
  %s10 = scalar_select 0, %s9, %s7
  $region1: #{tpu_custom_call.1} parent=0
    #allocation3 [shape = 'u8[8192]{0}', space=vmem, size = 0x2000, scoped, tag = 'input window, operand 0']
    #allocation4 [shape = 's32[2]{0}', space=sflag, size = 0x8, scoped, tag = 'scoped memory for tpu_custom_call.1']
    #allocation5 [shape = 's32[2]{0}', space=sflag, size = 0x8, scoped, tag = 'scoped memory for tpu_custom_call.1']
    #allocation6 [shape = 'u8[32768]{0}', space=vmem, size = 0x8000, scoped, tag = 'input window, operand 1']
    #allocation7 [shape = 's32[2]{0}', space=sflag, size = 0x8, scoped, tag = 'scoped memory for tpu_custom_call.1']
    #allocation8 [shape = 'u8[32768]{0}', space=vmem, size = 0x8000, scoped, tag = 'input window, operand 2']
    #allocation9 [shape = 'u8[32768]{0}', space=vmem, size = 0x8000, scoped, tag = 'input window, operand 3']
    #allocation10 [shape = 's32[2]{0}', space=sflag, size = 0x8, scoped, tag = 'scoped memory for tpu_custom_call.1']
    #allocation11 [shape = 'u8[4096]{0}', space=vmem, size = 0x1000, scoped, tag = 'input window, operand 4']
    #allocation12 [shape = 'u8[512]{0}', space=vmem, size = 0x400, scoped, tag = 'input window, operand 5, single buffered']
    #allocation13 [shape = 's32[1]{0}', space=sflag, size = 0x4, scoped, tag = 'scoped memory for tpu_custom_call.1']
    #allocation14 [shape = 'u8[8192]{0}', space=vmem, size = 0x2000, scoped, tag = 'output window, operand 0']
    %11 = vsyncpa [#allocation4], 0
    %s12 = scalar_lea.sflag [#allocation4], 1
    %13 = vsyncpa %s12, 0
    %14 = vsyncpa [#allocation7], 0
    %s15 = scalar_lea.sflag [#allocation7], 1
    %16 = vsyncpa %s15, 0
    %17 = vsyncpa [#allocation10], 0
    %s18 = scalar_lea.sflag [#allocation10], 1
    %19 = vsyncpa %s18, 0
    %20 = vsyncpa [#allocation13], 0
    %21 = vsyncpa [#allocation5], 0
    %s22 = scalar_lea.sflag [#allocation5], 1
    %23 = vsyncpa %s22, 0
    loop: start=0, step=1, limit=18
    $region2: #{tpu_custom_call.1} parent=1 // loop_pre_header
      _
    $region3: #{tpu_custom_call.1} parent=1 // loop_header
      %s25 = sphi 0, %s29
      %p26 = scmp.ge.s32.totalorder %s25, 18
      %s32 = sphi 0, %s44
      %s33 = sphi 0, %s40
      %s34 = sphi 0, %s32
      %s35 = sphi 0, %s33
      %s36 = sphi 0, %s34
      %s37 = sphi 0, %s35
      %s47 = sphi 0, %s49
      %s50 = sphi 0, %s47
      %s51 = sphi 0, %s50
      %s67 = sphi 0, %s51
      %s73 = sphi 0, %s75
      %s76 = sphi 0, %s73
      %s77 = sphi 0, %s76
      %s93 = sphi 0, %s77
      %s99 = sphi 0, %s101
      %s102 = sphi 0, %s99
      %s103 = sphi 0, %s102
      %s119 = sphi 0, %s103
      %s125 = sphi 0, %s127
      %s128 = sphi 0, %s125
      %s129 = sphi 0, %s128
      %s145 = sphi 0, %s129
      %s151 = sphi 0, %s153
      %s154 = sphi 0, %s151
      %s155 = sphi 0, %s154
      %s171 = sphi 0, %s155
      %s175 = sphi 0, %s175
      %s177 = sphi 0, %s175
      %s178 = sphi 0, %s177
      %s192 = sphi 0, %s178
      %s198 = sphi 0, %s200
      %s201 = sphi 0, %s198
      %s202 = sphi 0, %s201
      %s218 = sphi 0, %s202
    $region4: #{tpu_custom_call.1} parent=1 // loop_header_branch
      %28 = sbr.rel (%p26) target = $region8
    $region5: #{tpu_custom_call.1} parent=1 // loop_body
      %s30 = ssub.s32 %s25, 1
      %s31 = ssub.s32 %s25, 2
      %s38 = sadd.s32 1, %s33
      %p39 = scmp.ge.s32.totalorder %s38, 8
      %s40 = scalar_select %p39, 0, %s38
      %s41 = sadd.s32 1, %s32
      %s42 = scalar_select %p39, %s41, %s32
      %p43 = scmp.ge.s32.totalorder %s42, 2
      %s44 = scalar_select %p43, 0, %s42
      %s45 = ssub.s32 %s32, %s44
      %p46 = scmp.eq.s32.totalorder %s45, 0
      %s48 = sadd.s32 %s47, 1
      %s49 = scalar_select %p46, %s47, %s48
      %p52 = pneg %p46
      %p53 = scmp.eq.s32.totalorder %s25, 15
      %p54 = por %p52, %p53
      %p55 = scmp.ne.s32.totalorder %s47, %s50
      %p56 = scmp.eq.s32.totalorder %s25, 0
      %p57 = por %p55, %p56
      %p58 = scmp.ne.s32.totalorder %s47, %s50
      %p59 = scmp.eq.s32.totalorder %s30, 15
      %p60 = por %p58, %p59
      %p61 = scmp.ne.s32.totalorder %s50, %s51
      %p62 = scmp.eq.s32.totalorder %s30, 0
      %p63 = por %p61, %p62
      %p64 = scmp.ne.s32.totalorder %s50, %s51
      %p65 = scmp.eq.s32.totalorder %s31, 15
      %p66 = por %p64, %p65
      %p68 = scmp.ne.s32.totalorder %s51, %s67
      %p69 = scmp.eq.s32.totalorder %s31, 0
      %p70 = por %p68, %p69
      %s71 = ssub.s32 %s33, %s40
      %p72 = scmp.eq.s32.totalorder %s71, 0
      %s74 = sadd.s32 %s73, 1
      %s75 = scalar_select %p72, %s73, %s74
      %p78 = pneg %p72
      %p79 = scmp.eq.s32.totalorder %s25, 15
      %p80 = por %p78, %p79
      %p81 = scmp.ne.s32.totalorder %s73, %s76
      %p82 = scmp.eq.s32.totalorder %s25, 0
      %p83 = por %p81, %p82
      %p84 = scmp.ne.s32.totalorder %s73, %s76
      %p85 = scmp.eq.s32.totalorder %s30, 15
      %p86 = por %p84, %p85
      %p87 = scmp.ne.s32.totalorder %s76, %s77
      %p88 = scmp.eq.s32.totalorder %s30, 0
      %p89 = por %p87, %p88
      %p90 = scmp.ne.s32.totalorder %s76, %s77
      %p91 = scmp.eq.s32.totalorder %s31, 15
      %p92 = por %p90, %p91
      %p94 = scmp.ne.s32.totalorder %s77, %s93
      %p95 = scmp.eq.s32.totalorder %s31, 0
      %p96 = por %p94, %p95
      %s97 = ssub.s32 %s33, %s40
      %p98 = scmp.eq.s32.totalorder %s97, 0
      %s100 = sadd.s32 %s99, 1
      %s101 = scalar_select %p98, %s99, %s100
      %p104 = pneg %p98
      %p105 = scmp.eq.s32.totalorder %s25, 15
      %p106 = por %p104, %p105
      %p107 = scmp.ne.s32.totalorder %s99, %s102
      %p108 = scmp.eq.s32.totalorder %s25, 0
      %p109 = por %p107, %p108
      %p110 = scmp.ne.s32.totalorder %s99, %s102
      %p111 = scmp.eq.s32.totalorder %s30, 15
      %p112 = por %p110, %p111
      %p113 = scmp.ne.s32.totalorder %s102, %s103
      %p114 = scmp.eq.s32.totalorder %s30, 0
      %p115 = por %p113, %p114
      %p116 = scmp.ne.s32.totalorder %s102, %s103
      %p117 = scmp.eq.s32.totalorder %s31, 15
      %p118 = por %p116, %p117
      %p120 = scmp.ne.s32.totalorder %s103, %s119
      %p121 = scmp.eq.s32.totalorder %s31, 0
      %p122 = por %p120, %p121
      %s123 = ssub.s32 %s33, %s40
      %p124 = scmp.eq.s32.totalorder %s123, 0
      %s126 = sadd.s32 %s125, 1
      %s127 = scalar_select %p124, %s125, %s126
      %p130 = pneg %p124
      %p131 = scmp.eq.s32.totalorder %s25, 15
      %p132 = por %p130, %p131
      %p133 = scmp.ne.s32.totalorder %s125, %s128
      %p134 = scmp.eq.s32.totalorder %s25, 0
      %p135 = por %p133, %p134
      %p136 = scmp.ne.s32.totalorder %s125, %s128
      %p137 = scmp.eq.s32.totalorder %s30, 15
      %p138 = por %p136, %p137
      %p139 = scmp.ne.s32.totalorder %s128, %s129
      %p140 = scmp.eq.s32.totalorder %s30, 0
      %p141 = por %p139, %p140
      %p142 = scmp.ne.s32.totalorder %s128, %s129
      %p143 = scmp.eq.s32.totalorder %s31, 15
      %p144 = por %p142, %p143
      %p146 = scmp.ne.s32.totalorder %s129, %s145
      %p147 = scmp.eq.s32.totalorder %s31, 0
      %p148 = por %p146, %p147
      %s149 = ssub.s32 %s33, %s40
      %p150 = scmp.eq.s32.totalorder %s149, 0
      %s152 = sadd.s32 %s151, 1
      %s153 = scalar_select %p150, %s151, %s152
      %p156 = pneg %p150
      %p157 = scmp.eq.s32.totalorder %s25, 15
      %p158 = por %p156, %p157
      %p159 = scmp.ne.s32.totalorder %s151, %s154
      %p160 = scmp.eq.s32.totalorder %s25, 0
      %p161 = por %p159, %p160
      %p162 = scmp.ne.s32.totalorder %s151, %s154
      %p163 = scmp.eq.s32.totalorder %s30, 15
      %p164 = por %p162, %p163
      %p165 = scmp.ne.s32.totalorder %s154, %s155
      %p166 = scmp.eq.s32.totalorder %s30, 0
      %p167 = por %p165, %p166
      %p168 = scmp.ne.s32.totalorder %s154, %s155
      %p169 = scmp.eq.s32.totalorder %s31, 15
      %p170 = por %p168, %p169
      %p172 = scmp.ne.s32.totalorder %s155, %s171
      %p173 = scmp.eq.s32.totalorder %s31, 0
      %p174 = por %p172, %p173
      %s176 = sadd.s32 %s175, 1
      %p179 = scmp.eq.s32.totalorder %s25, 15
      %p180 = scmp.ne.s32.totalorder %s175, %s177
      %p181 = scmp.eq.s32.totalorder %s25, 0
      %p182 = por %p180, %p181
      %p183 = scmp.ne.s32.totalorder %s175, %s177
      %p184 = scmp.eq.s32.totalorder %s30, 15
      %p185 = por %p183, %p184
      %p186 = scmp.ne.s32.totalorder %s177, %s178
      %p187 = scmp.eq.s32.totalorder %s30, 0
      %p188 = por %p186, %p187
      %p189 = scmp.ne.s32.totalorder %s177, %s178
      %p190 = scmp.eq.s32.totalorder %s31, 15
      %p191 = por %p189, %p190
      %p193 = scmp.ne.s32.totalorder %s178, %s192
      %p194 = scmp.eq.s32.totalorder %s31, 0
      %p195 = por %p193, %p194
      %s196 = ssub.s32 %s32, %s44
      %p197 = scmp.eq.s32.totalorder %s196, 0
      %s199 = sadd.s32 %s198, 1
      %s200 = scalar_select %p197, %s198, %s199
      %p203 = pneg %p197
      %p204 = scmp.eq.s32.totalorder %s25, 15
      %p205 = por %p203, %p204
      %p206 = scmp.ne.s32.totalorder %s198, %s201
      %p207 = scmp.eq.s32.totalorder %s25, 0
      %p208 = por %p206, %p207
      %p209 = scmp.ne.s32.totalorder %s198, %s201
      %p210 = scmp.eq.s32.totalorder %s30, 15
      %p211 = por %p209, %p210
      %p212 = scmp.ne.s32.totalorder %s201, %s202
      %p213 = scmp.eq.s32.totalorder %s30, 0
      %p214 = por %p212, %p213
      %p215 = scmp.ne.s32.totalorder %s201, %s202
      %p216 = scmp.eq.s32.totalorder %s31, 15
      %p217 = por %p215, %p216
      %p219 = scmp.ne.s32.totalorder %s202, %s218
      %p220 = scmp.eq.s32.totalorder %s31, 0
      %p221 = por %p219, %p220
      %p222 = scmp.le.s32.totalorder 1, %s25
      %p223 = scmp.lt.s32.totalorder %s25, 17
      %p224 = pnand %p222, %p223
      %p225 = pneg %p224
      // Predicated region
      $region9: #{tpu_custom_call.1} parent=5 // pred_check
        _
      $region10: #{tpu_custom_call.1} parent=5 // pred_check_branch
        %227 = sbr.rel (%p224) target = $region12
      $region11: #{tpu_custom_call.1} parent=5 // pred_region
        %s228 = ssub.s32 %s25, 1
        // Predicated region
        $region13: #{tpu_custom_call.1} parent=11 // pred_check
          %p229 = pneg %p188
        $region14: #{tpu_custom_call.1} parent=11 // pred_check_branch
          %231 = sbr.rel (%p229) target = $region16
        $region15: #{tpu_custom_call.1} parent=11 // pred_region
          %s233 = ssub.s32 16, 16
          %234 = vsyncadd [#allocation13], %s233
          %s236 = sshll.u32 [#allocation12], 4
          %s237 = int_to_ptr.vmem [resolvable:$true] %s236
          %239 = dma.hbm_to_vmem [thread:$0]  %s5, 16, %s237, [#allocation13]
        $region16: #{tpu_custom_call.1} parent=11 // pred_fallthru
          _
      $region12: #{tpu_custom_call.1} parent=5 // pred_fallthru
        _
      %p240 = scmp.lt.s32.totalorder %s25, 16
      // Predicated region
      $region17: #{tpu_custom_call.1} parent=5 // pred_check
        %p241 = pneg %p240
      $region18: #{tpu_custom_call.1} parent=5 // pred_check_branch
        %243 = sbr.rel (%p241) target = $region20
      $region19: #{tpu_custom_call.1} parent=5 // pred_region
        // Predicated region
        $region21: #{tpu_custom_call.1} parent=19 // pred_check
          %p244 = pneg %p57
        $region22: #{tpu_custom_call.1} parent=19 // pred_check_branch
          %246 = sbr.rel (%p244) target = $region24
        $region23: #{tpu_custom_call.1} parent=19 // pred_region
          %s247 = sand.u32 %s47, 1
          %s248 = scalar_lea.sflag [#allocation4], %s247
          %s249 = sand.u32 %s47, 1
          %s250 = smul.addr %s249, 8
          %s251 = scalar_lea.vmem [#allocation3], %s250
          %s253 = ssub.s32 128, 128
          %254 = vsyncadd %s248, %s253
          %s255 = smul.addr %s32, 128
          %s256 = scalar_lea.hbm %s0, %s255
          %s258 = sshll.u32 %s251, 4
          %s259 = int_to_ptr.vmem [resolvable:$true] %s258
          %261 = dma.hbm_to_vmem [thread:$0]  %s256, 128, %s259, %s248
        $region24: #{tpu_custom_call.1} parent=19 // pred_fallthru
          _
        // Predicated region
        $region25: #{tpu_custom_call.1} parent=19 // pred_check
          %p262 = pneg %p83
        $region26: #{tpu_custom_call.1} parent=19 // pred_check_branch
          %264 = sbr.rel (%p262) target = $region28
        $region27: #{tpu_custom_call.1} parent=19 // pred_region
          %s265 = sand.u32 %s25, 1
          %s266 = scalar_lea.sflag [#allocation7], %s265
          %s267 = sand.u32 %s73, 1
          %s268 = smul.addr %s267, 32
          %s269 = scalar_lea.vmem [#allocation6], %s268
          %s271 = ssub.s32 512, 512
          %272 = vsyncadd %s266, %s271
          %s273 = smul.addr %s33, 4
          %s274 = smul.addr %s273, 128
          %s275 = scalar_lea.hbm %s1, %s274
          %s276 = sshll.u32 %s269, 4
          %s277 = int_to_ptr.vmem [resolvable:$true] %s276
          %282 = dma.hbm_to_vmem [thread:$0]  %s275, 512, %s277, %s266, 128, 128, 8
        $region28: #{tpu_custom_call.1} parent=19 // pred_fallthru
          _
        // Predicated region
        $region29: #{tpu_custom_call.1} parent=19 // pred_check
          %p283 = pneg %p109
        $region30: #{tpu_custom_call.1} parent=19 // pred_check_branch
          %285 = sbr.rel (%p283) target = $region32
        $region31: #{tpu_custom_call.1} parent=19 // pred_region
          %s286 = sand.u32 %s25, 1
          %s287 = scalar_lea.sflag [#allocation7], %s286
          %s288 = sand.u32 %s99, 1
          %s289 = smul.addr %s288, 32
          %s290 = scalar_lea.vmem [#allocation8], %s289
          %s292 = ssub.s32 512, 512
          %293 = vsyncadd %s287, %s292
          %s294 = smul.addr %s33, 4
          %s295 = smul.addr %s294, 128
          %s296 = scalar_lea.hbm %s2, %s295
          %s297 = sshll.u32 %s290, 4
          %s298 = int_to_ptr.vmem [resolvable:$true] %s297
          %303 = dma.hbm_to_vmem [thread:$0]  %s296, 512, %s298, %s287, 128, 128, 8
        $region32: #{tpu_custom_call.1} parent=19 // pred_fallthru
          _
        // Predicated region
        $region33: #{tpu_custom_call.1} parent=19 // pred_check
          %p304 = pneg %p135
        $region34: #{tpu_custom_call.1} parent=19 // pred_check_branch
          %306 = sbr.rel (%p304) target = $region36
        $region35: #{tpu_custom_call.1} parent=19 // pred_region
          %s307 = sand.u32 %s25, 1
          %s308 = scalar_lea.sflag [#allocation10], %s307
          %s309 = sand.u32 %s125, 1
          %s310 = smul.addr %s309, 32
          %s311 = scalar_lea.vmem [#allocation9], %s310
          %s313 = ssub.s32 512, 512
          %314 = vsyncadd %s308, %s313
          %s315 = smul.addr %s33, 4
          %s316 = smul.addr %s315, 128
          %s317 = scalar_lea.hbm %s3, %s316
          %s318 = sshll.u32 %s311, 4
          %s319 = int_to_ptr.vmem [resolvable:$true] %s318
          %324 = dma.hbm_to_vmem [thread:$0]  %s317, 512, %s319, %s308, 128, 128, 8
        $region36: #{tpu_custom_call.1} parent=19 // pred_fallthru
          _
        // Predicated region
        $region37: #{tpu_custom_call.1} parent=19 // pred_check
          %p325 = pneg %p161
        $region38: #{tpu_custom_call.1} parent=19 // pred_check_branch
          %327 = sbr.rel (%p325) target = $region40
        $region39: #{tpu_custom_call.1} parent=19 // pred_region
          %s328 = sand.u32 %s25, 1
          %s329 = scalar_lea.sflag [#allocation10], %s328
          %s330 = sand.u32 %s151, 1
          %s331 = smul.addr %s330, 4
          %s332 = scalar_lea.vmem [#allocation11], %s331
          %s334 = ssub.s32 64, 64
          %335 = vsyncadd %s329, %s334
          %s336 = smul.addr %s33, 64
          %s337 = scalar_lea.hbm %s4, %s336
          %s339 = sshll.u32 %s332, 4
          %s340 = int_to_ptr.vmem [resolvable:$true] %s339
          %342 = dma.hbm_to_vmem [thread:$0]  %s337, 64, %s340, %s329
        $region40: #{tpu_custom_call.1} parent=19 // pred_fallthru
          _
      $region20: #{tpu_custom_call.1} parent=5 // pred_fallthru
        _
      %p343 = scmp.le.s32.totalorder 1, %s25
      %p344 = scmp.lt.s32.totalorder %s25, 17
      %p345 = pnand %p343, %p344
      %p346 = pneg %p345
      // Predicated region
      $region41: #{tpu_custom_call.1} parent=5 // pred_check
        _
      $region42: #{tpu_custom_call.1} parent=5 // pred_check_branch
        %348 = sbr.rel (%p345) target = $region44
      $region43: #{tpu_custom_call.1} parent=5 // pred_region
        %s349 = ssub.s32 %s25, 1
        %s350 = sand.u32 %s50, 1
        %s351 = scalar_lea.sflag [#allocation4], %s350
        %s352 = sand.u32 %s50, 1
        %s353 = smul.addr %s352, 8
        %s354 = scalar_lea.vmem [#allocation3], %s353
        // Predicated region
        $region45: #{tpu_custom_call.1} parent=43 // pred_check
          %p355 = pneg %p63
        $region46: #{tpu_custom_call.1} parent=43 // pred_check_branch
          %357 = sbr.rel (%p355) target = $region48
        $region47: #{tpu_custom_call.1} parent=43 // pred_region
          %358 = dma.done %s351, 128
        $region48: #{tpu_custom_call.1} parent=43 // pred_fallthru
          _
        %s359 = sand.u32 %s30, 1
        %s360 = scalar_lea.sflag [#allocation7], %s359
        %s361 = sand.u32 %s76, 1
        %s362 = smul.addr %s361, 32
        %s363 = scalar_lea.vmem [#allocation6], %s362
        // Predicated region
        $region49: #{tpu_custom_call.1} parent=43 // pred_check
          %p364 = pneg %p89
        $region50: #{tpu_custom_call.1} parent=43 // pred_check_branch
          %366 = sbr.rel (%p364) target = $region52
        $region51: #{tpu_custom_call.1} parent=43 // pred_region
          %367 = dma.done %s360, 512
        $region52: #{tpu_custom_call.1} parent=43 // pred_fallthru
          _
        %s368 = sand.u32 %s30, 1
        %s369 = scalar_lea.sflag [#allocation7], %s368
        %s370 = sand.u32 %s102, 1
        %s371 = smul.addr %s370, 32
        %s372 = scalar_lea.vmem [#allocation8], %s371
        // Predicated region
        $region53: #{tpu_custom_call.1} parent=43 // pred_check
          %p373 = pneg %p115
        $region54: #{tpu_custom_call.1} parent=43 // pred_check_branch
          %375 = sbr.rel (%p373) target = $region56
        $region55: #{tpu_custom_call.1} parent=43 // pred_region
          %376 = dma.done %s369, 512
        $region56: #{tpu_custom_call.1} parent=43 // pred_fallthru
          _
        %s377 = sand.u32 %s30, 1
        %s378 = scalar_lea.sflag [#allocation10], %s377
        %s379 = sand.u32 %s128, 1
        %s380 = smul.addr %s379, 32
        %s381 = scalar_lea.vmem [#allocation9], %s380
        // Predicated region
        $region57: #{tpu_custom_call.1} parent=43 // pred_check
          %p382 = pneg %p141
        $region58: #{tpu_custom_call.1} parent=43 // pred_check_branch
          %384 = sbr.rel (%p382) target = $region60
        $region59: #{tpu_custom_call.1} parent=43 // pred_region
          %385 = dma.done %s378, 512
        $region60: #{tpu_custom_call.1} parent=43 // pred_fallthru
          _
        %s386 = sand.u32 %s30, 1
        %s387 = scalar_lea.sflag [#allocation10], %s386
        %s388 = sand.u32 %s154, 1
        %s389 = smul.addr %s388, 4
        %s390 = scalar_lea.vmem [#allocation11], %s389
        // Predicated region
        $region61: #{tpu_custom_call.1} parent=43 // pred_check
          %p391 = pneg %p167
        $region62: #{tpu_custom_call.1} parent=43 // pred_check_branch
          %393 = sbr.rel (%p391) target = $region64
        $region63: #{tpu_custom_call.1} parent=43 // pred_region
          %394 = dma.done %s387, 64
        $region64: #{tpu_custom_call.1} parent=43 // pred_fallthru
          _
        // Predicated region
        $region65: #{tpu_custom_call.1} parent=43 // pred_check
          %p395 = pneg %p188
        $region66: #{tpu_custom_call.1} parent=43 // pred_check_branch
          %397 = sbr.rel (%p395) target = $region68
        $region67: #{tpu_custom_call.1} parent=43 // pred_region
          %398 = dma.done [#allocation13], 16
        $region68: #{tpu_custom_call.1} parent=43 // pred_fallthru
          _
        %s399 = sand.u32 %s50, 1
        %s400 = scalar_lea.sflag [#allocation4], %s399
        %s401 = sand.u32 %s50, 1
        %s402 = smul.addr %s401, 8
        %s403 = scalar_lea.vmem [#allocation3], %s402
        %p404 = pneg %p63
        %p405 = pneg %p60
        %s406 = sand.u32 %s30, 1
        %s407 = scalar_lea.sflag [#allocation7], %s406
        %s408 = sand.u32 %s76, 1
        %s409 = smul.addr %s408, 32
        %s410 = scalar_lea.vmem [#allocation6], %s409
        %p411 = pneg %p89
        %p412 = pneg %p86
        %s413 = sand.u32 %s30, 1
        %s414 = scalar_lea.sflag [#allocation7], %s413
        %s415 = sand.u32 %s102, 1
        %s416 = smul.addr %s415, 32
        %s417 = scalar_lea.vmem [#allocation8], %s416
        %p418 = pneg %p115
        %p419 = pneg %p112
        %s420 = sand.u32 %s30, 1
        %s421 = scalar_lea.sflag [#allocation10], %s420
        %s422 = sand.u32 %s128, 1
        %s423 = smul.addr %s422, 32
        %s424 = scalar_lea.vmem [#allocation9], %s423
        %p425 = pneg %p141
        %p426 = pneg %p138
        %s427 = sand.u32 %s30, 1
        %s428 = scalar_lea.sflag [#allocation10], %s427
        %s429 = sand.u32 %s154, 1
        %s430 = smul.addr %s429, 4
        %s431 = scalar_lea.vmem [#allocation11], %s430
        %p432 = pneg %p167
        %p433 = pneg %p164
        %p434 = pneg %p188
        %p435 = pneg %p185
        %p436 = pneg %p214
        %p437 = pneg %p211
        %s438 = sand.u32 %s201, 1
        %s439 = scalar_lea.sflag [#allocation5], %s438
        %s440 = sand.u32 %s201, 1
        %s441 = smul.addr %s440, 8
        %s442 = scalar_lea.vmem [#allocation14], %s441
        %v443 = vld [vmem:[%s354] sm:$0xff]
        %v444 = vld [vmem:[%s363] sm:$0xff]
        %v445 = vld [vmem:[%s363 + $0x8] sm:$0xff]
        %v446 = vld [vmem:[%s363 + $0x10] sm:$0xff]
        %v447 = vld [vmem:[%s363 + $0x18] sm:$0xff]
        %vm448 = vcmask 261120
        %v450 = vsel %vm448, %v443, 0
        %452 = vmatprep.subr.mxu0 0.0
        %453 = vmatpush1.msra.mxu0 %v444
        %454 = vmatprep.subr.mxu0 0.0
        %455 = vmatpush1.msra.mxu0 %v445
        %456 = vmatprep.subr.mxu0 0.0
        %457 = vmatpush1.msra.mxu0 %v446
        %458 = vmatprep.subr.mxu0 0.0
        %459 = vmatpush1.msra.mxu0 %v447
        %460 = vmatprep.subr.mxu0 0.0
        %461 = vmatpush1.msra.mxu0 0.0
        %462 = vmatprep.subr.mxu0 0.0
        %463 = vmatpush1.msra.mxu0 0.0
        %464 = vmatprep.subr.mxu0 0.0
        %465 = vmatpush1.msra.mxu0 0.0
        %466 = vmatprep.subr.mxu0 0.0
        %467 = vmatpush1.msra.mxu0 0.0
        %468 = vmatprep.subr.mxu0 0.0
        %469 = vmatpush1.msra.mxu0 0.0
        %470 = vmatprep.subr.mxu0 0.0
        %471 = vmatpush1.msra.mxu0 0.0
        %472 = vmatprep.subr.mxu0 0.0
        %473 = vmatpush1.msra.mxu0 0.0
        %474 = vmatprep.subr.mxu0 0.0
        %475 = vmatpush1.msra.mxu0 0.0
        %476 = vmatprep.subr.mxu0 0.0
        %477 = vmatpush1.msra.mxu0 0.0
        %478 = vmatprep.subr.mxu0 0.0
        %479 = vmatpush1.msra.mxu0 0.0
        %480 = vmatprep.subr.mxu0 0.0
        %481 = vmatpush1.msra.mxu0 0.0
        %482 = vmatprep.subr.mxu0 0.0
        %483 = vmatpush1.msra.mxu0 0.0
        %484 = vmatprep.subr.mxu0 0.0
        %485 = vmatpush1.msra.mxu0 0.0
        %486 = vmatprep.subr.mxu0 0.0
        %487 = vmatpush1.msra.mxu0 0.0
        %488 = vmatprep.subr.mxu0 0.0
        %489 = vmatpush1.msra.mxu0 0.0
        %490 = vmatprep.subr.mxu0 0.0
        %491 = vmatpush1.msra.mxu0 0.0
        %492 = vmatprep.subr.mxu0 0.0
        %493 = vmatpush1.msra.mxu0 0.0
        %494 = vmatprep.subr.mxu0 0.0
        %495 = vmatpush1.msra.mxu0 0.0
        %496 = vmatprep.subr.mxu0 0.0
        %497 = vmatpush1.msra.mxu0 0.0
        %498 = vmatprep.subr.mxu0 0.0
        %499 = vmatpush1.msra.mxu0 0.0
        %500 = vmatprep.subr.mxu0 0.0
        %501 = vmatpush1.msra.mxu0 0.0
        %502 = vmatprep.subr.mxu0 0.0
        %503 = vmatpush1.msra.mxu0 0.0
        %504 = vmatprep.subr.mxu0 0.0
        %505 = vmatpush1.msra.mxu0 0.0
        %506 = vmatprep.subr.mxu0 0.0
        %507 = vmatpush1.msra.mxu0 0.0
        %508 = vmatprep.subr.mxu0 0.0
        %509 = vmatpush1.msra.mxu0 0.0
        %510 = vmatprep.subr.mxu0 0.0
        %511 = vmatpush1.msra.mxu0 0.0
        %512 = vmatprep.subr.mxu0 0.0
        %513 = vmatpush1.msra.mxu0 0.0
        %514 = vmatprep.subr.mxu0 0.0
        %515 = vmatpush1.msra.mxu0 0.0
        %516 = vmatprep.mubr.f32.mxu0 0.0
        %517 = vmatmul.mubr.f32.gmra.mrb[0].mxu0 %v450
        %v518 = vpop.f32.mrb[0].mxu0
        %v519 = vadd.f32 0.0, %v518
        %v520 = vpop.f32.mrb[0].mxu0
        %521 = vdwg.mxu0
        %v522 = vld [vmem:[%s372] sm:$0xff]
        %v523 = vld [vmem:[%s372 + $0x8] sm:$0xff]
        %v524 = vld [vmem:[%s372 + $0x10] sm:$0xff]
        %v525 = vld [vmem:[%s372 + $0x18] sm:$0xff]
        %526 = vmatprep.subr.mxu0 0.0
        %527 = vmatpush1.msra.mxu0 %v522
        %528 = vmatprep.subr.mxu0 0.0
        %529 = vmatpush1.msra.mxu0 %v523
        %530 = vmatprep.subr.mxu0 0.0
        %531 = vmatpush1.msra.mxu0 %v524
        %532 = vmatprep.subr.mxu0 0.0
        %533 = vmatpush1.msra.mxu0 %v525
        %534 = vmatprep.subr.mxu0 0.0
        %535 = vmatpush1.msra.mxu0 0.0
        %536 = vmatprep.subr.mxu0 0.0
        %537 = vmatpush1.msra.mxu0 0.0
        %538 = vmatprep.subr.mxu0 0.0
        %539 = vmatpush1.msra.mxu0 0.0
        %540 = vmatprep.subr.mxu0 0.0
        %541 = vmatpush1.msra.mxu0 0.0
        %542 = vmatprep.subr.mxu0 0.0
        %543 = vmatpush1.msra.mxu0 0.0
        %544 = vmatprep.subr.mxu0 0.0
        %545 = vmatpush1.msra.mxu0 0.0
        %546 = vmatprep.subr.mxu0 0.0
        %547 = vmatpush1.msra.mxu0 0.0
        %548 = vmatprep.subr.mxu0 0.0
        %549 = vmatpush1.msra.mxu0 0.0
        %550 = vmatprep.subr.mxu0 0.0
        %551 = vmatpush1.msra.mxu0 0.0
        %552 = vmatprep.subr.mxu0 0.0
        %553 = vmatpush1.msra.mxu0 0.0
        %554 = vmatprep.subr.mxu0 0.0
        %555 = vmatpush1.msra.mxu0 0.0
        %556 = vmatprep.subr.mxu0 0.0
        %557 = vmatpush1.msra.mxu0 0.0
        %558 = vmatprep.subr.mxu0 0.0
        %559 = vmatpush1.msra.mxu0 0.0
        %560 = vmatprep.subr.mxu0 0.0
        %561 = vmatpush1.msra.mxu0 0.0
        %562 = vmatprep.subr.mxu0 0.0
        %563 = vmatpush1.msra.mxu0 0.0
        %564 = vmatprep.subr.mxu0 0.0
        %565 = vmatpush1.msra.mxu0 0.0
        %566 = vmatprep.subr.mxu0 0.0
        %567 = vmatpush1.msra.mxu0 0.0
        %568 = vmatprep.subr.mxu0 0.0
        %569 = vmatpush1.msra.mxu0 0.0
        %570 = vmatprep.subr.mxu0 0.0
        %571 = vmatpush1.msra.mxu0 0.0
        %572 = vmatprep.subr.mxu0 0.0
        %573 = vmatpush1.msra.mxu0 0.0
        %574 = vmatprep.subr.mxu0 0.0
        %575 = vmatpush1.msra.mxu0 0.0
        %576 = vmatprep.subr.mxu0 0.0
        %577 = vmatpush1.msra.mxu0 0.0
        %578 = vmatprep.subr.mxu0 0.0
        %579 = vmatpush1.msra.mxu0 0.0
        %580 = vmatprep.subr.mxu0 0.0
        %581 = vmatpush1.msra.mxu0 0.0
        %582 = vmatprep.subr.mxu0 0.0
        %583 = vmatpush1.msra.mxu0 0.0
        %584 = vmatprep.subr.mxu0 0.0
        %585 = vmatpush1.msra.mxu0 0.0
        %586 = vmatprep.subr.mxu0 0.0
        %587 = vmatpush1.msra.mxu0 0.0
        %588 = vmatprep.subr.mxu0 0.0
        %589 = vmatpush1.msra.mxu0 0.0
        %590 = vmatprep.mubr.f32.mxu0 0.0
        %591 = vmatmul.mubr.f32.gmra.mrb[0].mxu0 %v450
        %v592 = vpop.f32.mrb[0].mxu0
        %v593 = vadd.f32 0.0, %v592
        %v594 = vpop.f32.mrb[0].mxu0
        %595 = vdwg.mxu0
        %v596 = vld [vmem:[%s381] sm:$0xff]
        %v597 = vld [vmem:[%s381 + $0x8] sm:$0xff]
        %v598 = vld [vmem:[%s381 + $0x10] sm:$0xff]
        %v599 = vld [vmem:[%s381 + $0x18] sm:$0xff]
        %600 = vmatprep.subr.mxu0 0.0
        %601 = vmatpush1.msra.mxu0 %v596
        %602 = vmatprep.subr.mxu0 0.0
        %603 = vmatpush1.msra.mxu0 %v597
        %604 = vmatprep.subr.mxu0 0.0
        %605 = vmatpush1.msra.mxu0 %v598
        %606 = vmatprep.subr.mxu0 0.0
        %607 = vmatpush1.msra.mxu0 %v599
        %608 = vmatprep.subr.mxu0 0.0
        %609 = vmatpush1.msra.mxu0 0.0
        %610 = vmatprep.subr.mxu0 0.0
        %611 = vmatpush1.msra.mxu0 0.0
        %612 = vmatprep.subr.mxu0 0.0
        %613 = vmatpush1.msra.mxu0 0.0
        %614 = vmatprep.subr.mxu0 0.0
        %615 = vmatpush1.msra.mxu0 0.0
        %616 = vmatprep.subr.mxu0 0.0
        %617 = vmatpush1.msra.mxu0 0.0
        %618 = vmatprep.subr.mxu0 0.0
        %619 = vmatpush1.msra.mxu0 0.0
        %620 = vmatprep.subr.mxu0 0.0
        %621 = vmatpush1.msra.mxu0 0.0
        %622 = vmatprep.subr.mxu0 0.0
        %623 = vmatpush1.msra.mxu0 0.0
        %624 = vmatprep.subr.mxu0 0.0
        %625 = vmatpush1.msra.mxu0 0.0
        %626 = vmatprep.subr.mxu0 0.0
        %627 = vmatpush1.msra.mxu0 0.0
        %628 = vmatprep.subr.mxu0 0.0
        %629 = vmatpush1.msra.mxu0 0.0
        %630 = vmatprep.subr.mxu0 0.0
        %631 = vmatpush1.msra.mxu0 0.0
        %632 = vmatprep.subr.mxu0 0.0
        %633 = vmatpush1.msra.mxu0 0.0
        %634 = vmatprep.subr.mxu0 0.0
        %635 = vmatpush1.msra.mxu0 0.0
        %636 = vmatprep.subr.mxu0 0.0
        %637 = vmatpush1.msra.mxu0 0.0
        %638 = vmatprep.subr.mxu0 0.0
        %639 = vmatpush1.msra.mxu0 0.0
        %640 = vmatprep.subr.mxu0 0.0
        %641 = vmatpush1.msra.mxu0 0.0
        %642 = vmatprep.subr.mxu0 0.0
        %643 = vmatpush1.msra.mxu0 0.0
        %644 = vmatprep.subr.mxu0 0.0
        %645 = vmatpush1.msra.mxu0 0.0
        %646 = vmatprep.subr.mxu0 0.0
        %647 = vmatpush1.msra.mxu0 0.0
        %648 = vmatprep.subr.mxu0 0.0
        %649 = vmatpush1.msra.mxu0 0.0
        %650 = vmatprep.subr.mxu0 0.0
        %651 = vmatpush1.msra.mxu0 0.0
        %652 = vmatprep.subr.mxu0 0.0
        %653 = vmatpush1.msra.mxu0 0.0
        %654 = vmatprep.subr.mxu0 0.0
        %655 = vmatpush1.msra.mxu0 0.0
        %656 = vmatprep.subr.mxu0 0.0
        %657 = vmatpush1.msra.mxu0 0.0
        %658 = vmatprep.subr.mxu0 0.0
        %659 = vmatpush1.msra.mxu0 0.0
        %660 = vmatprep.subr.mxu0 0.0
        %661 = vmatpush1.msra.mxu0 0.0
        %662 = vmatprep.subr.mxu0 0.0
        %663 = vmatpush1.msra.mxu0 0.0
        %664 = vmatprep.mubr.f32.mxu0 0.0
        %665 = vmatmul.mubr.f32.gmra.mrb[0].mxu0 %v450
        %v666 = vpop.f32.mrb[0].mxu0
        %v667 = vadd.f32 0.0, %v666
        %v668 = vpop.f32.mrb[0].mxu0
        %669 = vdwg.mxu0
        %vm670 = vcmask 31744
        %v672 = vsel %vm670, %v519, 0
        %v675 = vsel %vm670, %v593, 0
        %677 = vmatprep.subr.mxu0 0.0
        %678 = vmatpush1.xpose.msra.mxu0 %v675
        %679 = vmatprep.subr.mxu0 0.0
        %680 = vmatpush1.xpose.msra.mxu0 0.0
        %681 = vmatprep.subr.mxu0 0.0
        %682 = vmatpush1.xpose.msra.mxu0 0.0
        %683 = vmatprep.subr.mxu0 0.0
        %684 = vmatpush1.xpose.msra.mxu0 0.0
        %685 = vmatprep.subr.mxu0 0.0
        %686 = vmatpush1.xpose.msra.mxu0 0.0
        %687 = vmatprep.subr.mxu0 0.0
        %688 = vmatpush1.xpose.msra.mxu0 0.0
        %689 = vmatprep.subr.mxu0 0.0
        %690 = vmatpush1.xpose.msra.mxu0 0.0
        %691 = vmatprep.subr.mxu0 0.0
        %692 = vmatpush1.xpose.msra.mxu0 0.0
        %693 = vmatprep.subr.mxu0 0.0
        %694 = vmatpush1.xpose.msra.mxu0 0.0
        %695 = vmatprep.subr.mxu0 0.0
        %696 = vmatpush1.xpose.msra.mxu0 0.0
        %697 = vmatprep.subr.mxu0 0.0
        %698 = vmatpush1.xpose.msra.mxu0 0.0
        %699 = vmatprep.subr.mxu0 0.0
        %700 = vmatpush1.xpose.msra.mxu0 0.0
        %701 = vmatprep.subr.mxu0 0.0
        %702 = vmatpush1.xpose.msra.mxu0 0.0
        %703 = vmatprep.subr.mxu0 0.0
        %704 = vmatpush1.xpose.msra.mxu0 0.0
        %705 = vmatprep.subr.mxu0 0.0
        %706 = vmatpush1.xpose.msra.mxu0 0.0
        %707 = vmatprep.subr.mxu0 0.0
        %708 = vmatpush1.xpose.msra.mxu0 0.0
        %709 = vmatprep.subr.mxu0 0.0
        %710 = vmatpush1.xpose.msra.mxu0 0.0
        %711 = vmatprep.subr.mxu0 0.0
        %712 = vmatpush1.xpose.msra.mxu0 0.0
        %713 = vmatprep.subr.mxu0 0.0
        %714 = vmatpush1.xpose.msra.mxu0 0.0
        %715 = vmatprep.subr.mxu0 0.0
        %716 = vmatpush1.xpose.msra.mxu0 0.0
        %717 = vmatprep.subr.mxu0 0.0
        %718 = vmatpush1.xpose.msra.mxu0 0.0
        %719 = vmatprep.subr.mxu0 0.0
        %720 = vmatpush1.xpose.msra.mxu0 0.0
        %721 = vmatprep.subr.mxu0 0.0
        %722 = vmatpush1.xpose.msra.mxu0 0.0
        %723 = vmatprep.subr.mxu0 0.0
        %724 = vmatpush1.xpose.msra.mxu0 0.0
        %725 = vmatprep.subr.mxu0 0.0
        %726 = vmatpush1.xpose.msra.mxu0 0.0
        %727 = vmatprep.subr.mxu0 0.0
        %728 = vmatpush1.xpose.msra.mxu0 0.0
        %729 = vmatprep.subr.mxu0 0.0
        %730 = vmatpush1.xpose.msra.mxu0 0.0
        %731 = vmatprep.subr.mxu0 0.0
        %732 = vmatpush1.xpose.msra.mxu0 0.0
        %733 = vmatprep.subr.mxu0 0.0
        %734 = vmatpush1.xpose.msra.mxu0 0.0
        %735 = vmatprep.subr.mxu0 0.0
        %736 = vmatpush1.xpose.msra.mxu0 0.0
        %737 = vmatprep.subr.mxu0 0.0
        %738 = vmatpush1.xpose.msra.mxu0 0.0
        %739 = vmatprep.subr.mxu0 0.0
        %740 = vmatpush1.xpose.msra.mxu0 0.0
        %741 = vmatprep.mubr.f32.mxu0 0.0
        %742 = vmatmul.mubr.f32.gmra.mrb[0].mxu0 %v672
        %v743 = vpop.f32.mrb[0].mxu0
        %v744 = vadd.f32 0.0, %v743
        %v745 = vpop.f32.mrb[0].mxu0
        %746 = vdwg.mxu0
        %vm747 = vcmask 64512
        %v748 = vsel %vm747, %v744, -inf
        %749 = vmax.xlane.f32.xlu0 %v748
        %v750 = vpop.xlane.xlu0 %749
        %v751 = vsub.f32 %v744, %v750
        %v752 = vmul.f32 %v751, 1.442695
        %v753 = vpow.pop %v752
        %v754 = vsel %vm747, %v753, 0.0
        %755 = vadd.xlane.f32.xlu0 %v754
        %v756 = vpop.xlane.xlu0 %755
        %v757 = vrcp.pop %v756
        %v758 = vmul.f32 %v753, %v757
        %v760 = vsel %vm747, %v758, 0
        %762 = vmatprep.subr.mxu0 0.0
        %763 = vmatpush1.msra.mxu0 %v667
        %764 = vmatprep.subr.mxu0 0.0
        %765 = vmatpush1.msra.mxu0 0.0
        %766 = vmatprep.subr.mxu0 0.0
        %767 = vmatpush1.msra.mxu0 0.0
        %768 = vmatprep.subr.mxu0 0.0
        %769 = vmatpush1.msra.mxu0 0.0
        %770 = vmatprep.subr.mxu0 0.0
        %771 = vmatpush1.msra.mxu0 0.0
        %772 = vmatprep.subr.mxu0 0.0
        %773 = vmatpush1.msra.mxu0 0.0
        %774 = vmatprep.subr.mxu0 0.0
        %775 = vmatpush1.msra.mxu0 0.0
        %776 = vmatprep.subr.mxu0 0.0
        %777 = vmatpush1.msra.mxu0 0.0
        %778 = vmatprep.subr.mxu0 0.0
        %779 = vmatpush1.msra.mxu0 0.0
        %780 = vmatprep.subr.mxu0 0.0
        %781 = vmatpush1.msra.mxu0 0.0
        %782 = vmatprep.subr.mxu0 0.0
        %783 = vmatpush1.msra.mxu0 0.0
        %784 = vmatprep.subr.mxu0 0.0
        %785 = vmatpush1.msra.mxu0 0.0
        %786 = vmatprep.subr.mxu0 0.0
        %787 = vmatpush1.msra.mxu0 0.0
        %788 = vmatprep.subr.mxu0 0.0
        %789 = vmatpush1.msra.mxu0 0.0
        %790 = vmatprep.subr.mxu0 0.0
        %791 = vmatpush1.msra.mxu0 0.0
        %792 = vmatprep.subr.mxu0 0.0
        %793 = vmatpush1.msra.mxu0 0.0
        %794 = vmatprep.subr.mxu0 0.0
        %795 = vmatpush1.msra.mxu0 0.0
        %796 = vmatprep.subr.mxu0 0.0
        %797 = vmatpush1.msra.mxu0 0.0
        %798 = vmatprep.subr.mxu0 0.0
        %799 = vmatpush1.msra.mxu0 0.0
        %800 = vmatprep.subr.mxu0 0.0
        %801 = vmatpush1.msra.mxu0 0.0
        %802 = vmatprep.subr.mxu0 0.0
        %803 = vmatpush1.msra.mxu0 0.0
        %804 = vmatprep.subr.mxu0 0.0
        %805 = vmatpush1.msra.mxu0 0.0
        %806 = vmatprep.subr.mxu0 0.0
        %807 = vmatpush1.msra.mxu0 0.0
        %808 = vmatprep.subr.mxu0 0.0
        %809 = vmatpush1.msra.mxu0 0.0
        %810 = vmatprep.subr.mxu0 0.0
        %811 = vmatpush1.msra.mxu0 0.0
        %812 = vmatprep.subr.mxu0 0.0
        %813 = vmatpush1.msra.mxu0 0.0
        %814 = vmatprep.subr.mxu0 0.0
        %815 = vmatpush1.msra.mxu0 0.0
        %816 = vmatprep.subr.mxu0 0.0
        %817 = vmatpush1.msra.mxu0 0.0
        %818 = vmatprep.subr.mxu0 0.0
        %819 = vmatpush1.msra.mxu0 0.0
        %820 = vmatprep.subr.mxu0 0.0
        %821 = vmatpush1.msra.mxu0 0.0
        %822 = vmatprep.subr.mxu0 0.0
        %823 = vmatpush1.msra.mxu0 0.0
        %824 = vmatprep.subr.mxu0 0.0
        %825 = vmatpush1.msra.mxu0 0.0
        %826 = vmatprep.mubr.f32.mxu0 0.0
        %827 = vmatmul.mubr.f32.gmra.mrb[0].mxu0 %v760
        %v828 = vpop.f32.mrb[0].mxu0
        %v829 = vadd.f32 0.0, %v828
        %v830 = vpop.f32.mrb[0].mxu0
        %831 = vdwg.mxu0
        %v832 = vld [vmem:[%s390] sm:$0xf]
        %v834 = vsel %vm670, %v829, 0
        %vm836 = vcmask 1043456
        %v838 = vsel %vm836, %v832, 0
        %840 = vmatprep.subr.mxu0 0.0
        %841 = vmatpush1.msra.mxu0 %v838
        %842 = vmatprep.subr.mxu0 0.0
        %843 = vmatpush1.msra.mxu0 0.0
        %844 = vmatprep.subr.mxu0 0.0
        %845 = vmatpush1.msra.mxu0 0.0
        %846 = vmatprep.subr.mxu0 0.0
        %847 = vmatpush1.msra.mxu0 0.0
        %848 = vmatprep.subr.mxu0 0.0
        %849 = vmatpush1.msra.mxu0 0.0
        %850 = vmatprep.subr.mxu0 0.0
        %851 = vmatpush1.msra.mxu0 0.0
        %852 = vmatprep.subr.mxu0 0.0
        %853 = vmatpush1.msra.mxu0 0.0
        %854 = vmatprep.subr.mxu0 0.0
        %855 = vmatpush1.msra.mxu0 0.0
        %856 = vmatprep.subr.mxu0 0.0
        %857 = vmatpush1.msra.mxu0 0.0
        %858 = vmatprep.subr.mxu0 0.0
        %859 = vmatpush1.msra.mxu0 0.0
        %860 = vmatprep.subr.mxu0 0.0
        %861 = vmatpush1.msra.mxu0 0.0
        %862 = vmatprep.subr.mxu0 0.0
        %863 = vmatpush1.msra.mxu0 0.0
        %864 = vmatprep.subr.mxu0 0.0
        %865 = vmatpush1.msra.mxu0 0.0
        %866 = vmatprep.subr.mxu0 0.0
        %867 = vmatpush1.msra.mxu0 0.0
        %868 = vmatprep.subr.mxu0 0.0
        %869 = vmatpush1.msra.mxu0 0.0
        %870 = vmatprep.subr.mxu0 0.0
        %871 = vmatpush1.msra.mxu0 0.0
        %872 = vmatprep.subr.mxu0 0.0
        %873 = vmatpush1.msra.mxu0 0.0
        %874 = vmatprep.subr.mxu0 0.0
        %875 = vmatpush1.msra.mxu0 0.0
        %876 = vmatprep.subr.mxu0 0.0
        %877 = vmatpush1.msra.mxu0 0.0
        %878 = vmatprep.subr.mxu0 0.0
        %879 = vmatpush1.msra.mxu0 0.0
        %880 = vmatprep.subr.mxu0 0.0
        %881 = vmatpush1.msra.mxu0 0.0
        %882 = vmatprep.subr.mxu0 0.0
        %883 = vmatpush1.msra.mxu0 0.0
        %884 = vmatprep.subr.mxu0 0.0
        %885 = vmatpush1.msra.mxu0 0.0
        %886 = vmatprep.subr.mxu0 0.0
        %887 = vmatpush1.msra.mxu0 0.0
        %888 = vmatprep.subr.mxu0 0.0
        %889 = vmatpush1.msra.mxu0 0.0
        %890 = vmatprep.subr.mxu0 0.0
        %891 = vmatpush1.msra.mxu0 0.0
        %892 = vmatprep.subr.mxu0 0.0
        %893 = vmatpush1.msra.mxu0 0.0
        %894 = vmatprep.subr.mxu0 0.0
        %895 = vmatpush1.msra.mxu0 0.0
        %896 = vmatprep.subr.mxu0 0.0
        %897 = vmatpush1.msra.mxu0 0.0
        %898 = vmatprep.subr.mxu0 0.0
        %899 = vmatpush1.msra.mxu0 0.0
        %900 = vmatprep.subr.mxu0 0.0
        %901 = vmatpush1.msra.mxu0 0.0
        %902 = vmatprep.subr.mxu0 0.0
        %903 = vmatpush1.msra.mxu0 0.0
        %904 = vmatprep.mubr.f32.mxu0 0.0
        %905 = vmatmul.mubr.f32.gmra.mrb[0].mxu0 %v834
        %v906 = vpop.f32.mrb[0].mxu0
        %v907 = vadd.f32 0.0, %v906
        %v908 = vpop.f32.mrb[0].mxu0
        %909 = vdwg.mxu0
        %p910 = scmp.eq.s32.totalorder %s35, 0
        // Predicated region
        $region69: #{tpu_custom_call.1} parent=43 // pred_check
          %p911 = pneg %p910
        $region70: #{tpu_custom_call.1} parent=43 // pred_check_branch
          %913 = sbr.rel (%p911) target = $region72
        $region71: #{tpu_custom_call.1} parent=43 // pred_region
          %v914 = vld [vmem:[#allocation12] sm:$0x1]
          %v916 = vlaneseq
          %v917 = vshrl.u32 %v916, 7
          %v918 = vsub.s32 0, %v917
          %v919 = vrot.slane %v914, %v918
          %921 = vst.msk [vmem:[#allocation2] sm:$0xff] %vm448, %v919
        $region72: #{tpu_custom_call.1} parent=43 // pred_fallthru
          _
        %v922 = vld [vmem:[#allocation2] sm:$0xff]
        %v923 = vadd.f32 %v922, %v907
        %924 = vst.msk [vmem:[#allocation2] sm:$0xff] %vm448, %v923
        %p925 = scmp.eq.s32.totalorder %s35, 7
        // Predicated region
        $region73: #{tpu_custom_call.1} parent=43 // pred_check
          %p926 = pneg %p925
        $region74: #{tpu_custom_call.1} parent=43 // pred_check_branch
          %928 = sbr.rel (%p926) target = $region76
        $region75: #{tpu_custom_call.1} parent=43 // pred_region
          %v929 = vld [vmem:[#allocation2] sm:$0xff]
          %930 = vst.msk [vmem:[%s442] sm:$0xff] %vm448, %v929
        $region76: #{tpu_custom_call.1} parent=43 // pred_fallthru
          _
        %s931 = sand.u32 %s201, 1
        %s932 = scalar_lea.sflag [#allocation5], %s931
        %s933 = sand.u32 %s201, 1
        %s934 = smul.addr %s933, 8
        %s935 = scalar_lea.vmem [#allocation14], %s934
        // Predicated region
        $region77: #{tpu_custom_call.1} parent=43 // pred_check
          %p936 = pneg %p211
        $region78: #{tpu_custom_call.1} parent=43 // pred_check_branch
          %938 = sbr.rel (%p936) target = $region80
        $region79: #{tpu_custom_call.1} parent=43 // pred_region
          %s940 = ssub.s32 128, 128
          %941 = vsyncadd %s932, %s940
          %s942 = smul.addr %s34, 128
          %s943 = scalar_lea.hbm %s6, %s942
          %s945 = sshll.u32 %s935, 4
          %s946 = int_to_ptr.vmem [resolvable:$true] %s945
          %948 = dma.vmem_to_hbm [thread:$0]  %s946, 128, %s943, %s932
        $region80: #{tpu_custom_call.1} parent=43 // pred_fallthru
          _
      $region44: #{tpu_custom_call.1} parent=5 // pred_fallthru
        _
      %p949 = scmp.le.s32.totalorder 2, %s25
      // Predicated region
      $region81: #{tpu_custom_call.1} parent=5 // pred_check
        %p950 = pneg %p949
      $region82: #{tpu_custom_call.1} parent=5 // pred_check_branch
        %952 = sbr.rel (%p950) target = $region84
      $region83: #{tpu_custom_call.1} parent=5 // pred_region
        %s953 = ssub.s32 %s25, 2
        // Predicated region
        $region85: #{tpu_custom_call.1} parent=83 // pred_check
          %p954 = pneg %p217
        $region86: #{tpu_custom_call.1} parent=83 // pred_check_branch
          %956 = sbr.rel (%p954) target = $region88
        $region87: #{tpu_custom_call.1} parent=83 // pred_region
          %s957 = sand.u32 %s202, 1
          %s958 = scalar_lea.sflag [#allocation5], %s957
          %s959 = sand.u32 %s202, 1
          %s960 = smul.addr %s959, 8
          %s961 = scalar_lea.vmem [#allocation14], %s960
          %962 = dma.done %s958, 128
        $region88: #{tpu_custom_call.1} parent=83 // pred_fallthru
          _
      $region84: #{tpu_custom_call.1} parent=5 // pred_fallthru
        _
    $region6: #{tpu_custom_call.1} parent=1 // loop_footer
      %s29 = sadd.s32 1, %s25
    $region7: #{tpu_custom_call.1} parent=1 // loop_footer_branch
      %24 = sbr.rel target = $region3
    $region8: #{tpu_custom_call.1} parent=1 // loop_exit
      _
    %963 = vsyncpa [#allocation4], 1
    %s964 = scalar_lea.sflag [#allocation4], 1
    %965 = vsyncpa %s964, 1
    %966 = vsyncpa [#allocation7], 1
    %s967 = scalar_lea.sflag [#allocation7], 1
    %968 = vsyncpa %s967, 1
    %969 = vsyncpa [#allocation10], 1
    %s970 = scalar_lea.sflag [#allocation10], 1
    %971 = vsyncpa %s970, 1
    %972 = vsyncpa [#allocation13], 1
    %973 = vsyncpa [#allocation5], 1
    %s974 = scalar_lea.sflag [#allocation5], 1
    %975 = vsyncpa %s974, 1

</llo_original>
